<compile_context>
chip_gen: v5e
topology: v5e:2x2
jax: 0.10.0
libtpu: 0.0.40
codegen_flags: <defaults>
</compile_context>

<pallas_src>
import jax
import jax.numpy as jnp
from jax import lax
from jax.experimental import pallas as pl
from jax.experimental.pallas import tpu as pltpu


# ---------------------------------------------------------------------------
# Kernels
# ---------------------------------------------------------------------------
def _linear_resident_kernel(x_ref, w_ref, b_ref, o_ref):
    """o = x @ w.T + b with the full (N, K) weight resident in VMEM.

    No K reduction loop, no accumulator scratch, no transposed weight copy:
    dot_general contracts x dim 1 against w dim 1 directly on the MXU.
    """
    y = lax.dot_general(
        x_ref[...],
        w_ref[...],
        dimension_numbers=(((1,), (1,)), ((), ())),
        preferred_element_type=jnp.float32,
    )
    o_ref[...] = (y + b_ref[...]).astype(o_ref.dtype)


def _linear_tiled_kernel(x_ref, wt_ref, b_ref, o_ref, acc_ref):
    """Fallback 3-D tiled matmul with K reduction (only for very large dim).

    wt_ref is a (tk, tn) tile of the pre-transposed (K, N) weight, so the MXU
    sees a plain NN matmul (no per-tile XLU transpose).
    """
    k = pl.program_id(2)

    @pl.when(k == 0)
    def _():
        acc_ref[...] = jnp.zeros_like(acc_ref)

    acc_ref[...] += jnp.dot(x_ref[...], wt_ref[...],
                            preferred_element_type=jnp.float32)

    @pl.when(k == pl.num_programs(2) - 1)
    def _():
        o_ref[...] = (acc_ref[...] + b_ref[...]).astype(o_ref.dtype)


# ---------------------------------------------------------------------------
# Helpers
# ---------------------------------------------------------------------------
def _round_up(a, b):
    return ((a + b - 1) // b) * b


def _vmem_capacity_bytes():
    try:
        return int(pltpu.get_tpu_info().vmem_capacity_bytes)
    except Exception:
        return 64 << 20   # conservative (v7x per-core VMEM)


def _rows_resident_call(xp, weight, b2d, out_dtype, tm_rows, grid_rows,
                        vmem_limit, single_buffer):
    """Path 2: weight resident in VMEM, x/out streamed by row tiles."""
    N, K = weight.shape
    if single_buffer:
        w_spec = pl.BlockSpec((N, K), lambda i: (0, 0),
                              pipeline_mode=pl.Buffered(1))
        b_spec = pl.BlockSpec((1, N), lambda i: (0, 0),
                              pipeline_mode=pl.Buffered(1))
    else:
        w_spec = pl.BlockSpec((N, K), lambda i: (0, 0))
        b_spec = pl.BlockSpec((1, N), lambda i: (0, 0))

    # With <4 row tiles, keep work on one core: a "parallel" split would make
    # each v7x TensorCore re-DMA the full resident weight for little gain.
    semantics = ("arbitrary",) if grid_rows < 4 else ("parallel",)

    return pl.pallas_call(
        _linear_resident_kernel,
        out_shape=jax.ShapeDtypeStruct((xp.shape[0], N), out_dtype),
        grid_spec=pltpu.PrefetchScalarGridSpec(
            num_scalar_prefetch=0,
            grid=(grid_rows,),
            in_specs=[
                pl.BlockSpec((tm_rows, K), lambda i: (i, 0)),   # x row tile
                w_spec,                                         # resident weight
                b_spec,                                         # resident bias
            ],
            out_specs=pl.BlockSpec((tm_rows, N), lambda i: (i, 0)),
        ),
        compiler_params=pltpu.CompilerParams(
            dimension_semantics=semantics,
            vmem_limit_bytes=vmem_limit),
    )(xp, weight, b2d)


# ---------------------------------------------------------------------------
# Wrapper
# ---------------------------------------------------------------------------
def linear_pallas(x, weight, bias, *, block_m=512, tm=256, tn=512, tk=512,
                  compute_dtype=None):
    """y = x @ weight.T + bias, matching torch.nn.Linear semantics.

    `weight` is (out_features, in_features) exactly as in PyTorch.
    `compute_dtype=jnp.bfloat16` optionally casts x/weight for the MXU while
    keeping f32 accumulation and the original output dtype.
    """
    orig_lead = x.shape[:-1]
    out_dtype = x.dtype
    N, K = weight.shape
    assert x.shape[-1] == K
    x2d = x.reshape(-1, K)
    M = x2d.shape[0]
    b2d = bias.astype(jnp.float32).reshape(1, N)

    if compute_dtype is not None:
        x2d = x2d.astype(compute_dtype)
        weight = weight.astype(compute_dtype)

    itemsize = jnp.dtype(x2d.dtype).itemsize
    out_itemsize = jnp.dtype(out_dtype).itemsize
    w_bytes = N * K * itemsize

    vmem_cap = _vmem_capacity_bytes()
    budget = int(vmem_cap * 0.7)              # scoped-VMEM ceiling we allow

    # ---- Path 1: small M, whole problem in VMEM, single invocation. -------
    total1 = (w_bytes + M * K * itemsize + M * N * out_itemsize
              + N * 4 + (1 << 20))
    if M <= 128 and total1 <= budget:
        out = pl.pallas_call(
            _linear_resident_kernel,
            out_shape=jax.ShapeDtypeStruct((M, N), out_dtype),
            in_specs=[
                pl.BlockSpec(memory_space=pltpu.MemorySpace.VMEM),  # x
                pl.BlockSpec(memory_space=pltpu.MemorySpace.VMEM),  # weight (N,K)
                pl.BlockSpec(memory_space=pltpu.MemorySpace.VMEM),  # bias (1,N)
            ],
            out_specs=pl.BlockSpec(memory_space=pltpu.MemorySpace.VMEM),
            compiler_params=pltpu.CompilerParams(
                vmem_limit_bytes=min(budget, max(total1 + (2 << 20), 16 << 20))),
        )(x2d, weight, b2d)
        return out.reshape(*orig_lead, N)

    # ---- Path 2: weight resident in VMEM, row-tiled x / out. --------------
    # Cap the resident weight well below physical VMEM (v7x has only 64 MiB).
    w_resident_max = min(vmem_cap // 6, 20 << 20)
    if w_bytes <= w_resident_max:

        def est(rows, w_bufs):
            return (w_bufs * w_bytes + 8 * N * 4
                    + 2 * rows * K * itemsize          # double-buffered x tile
                    + 2 * rows * N * out_itemsize      # double-buffered out tile
                    + (2 << 20))                       # margin

        candidates = [c for c in (1024, 512, 256, 128, 64, 32, 16, 8)
                      if c <= max(block_m, 8)]
        tm_rows = candidates[-1]
        for c in candidates:
            if est(c, 1) <= budget:
                tm_rows = c
                break
        tm_rows = min(tm_rows, _round_up(M, 8))        # keep multiple of 8

        m_pad = _round_up(M, tm_rows)
        xp = jnp.pad(x2d, ((0, m_pad - M), (0, 0))) if m_pad != M else x2d
        grid_rows = m_pad // tm_rows

        try:
            vmem_limit = min(budget, max(est(tm_rows, 1), 16 << 20))
            out = _rows_resident_call(xp, weight, b2d, out_dtype, tm_rows,
                                      grid_rows, vmem_limit, single_buffer=True)
            out = jax.block_until_ready(out)
        except Exception:
            # Fallback if single-buffering is rejected: default buffering,
            # with a VMEM estimate that counts the weight twice.
            vmem_limit = min(budget, max(est(tm_rows, 2), 16 << 20))
            out = _rows_resident_call(xp, weight, b2d, out_dtype, tm_rows,
                                      grid_rows, vmem_limit, single_buffer=False)

        out = out[:M] if m_pad != M else out
        return out.reshape(*orig_lead, N)

    # ---- Path 3: very large dim -> classic 3-D tiling with K reduction. ---
    tm3 = min(tm, _round_up(M, 8))
    wt = weight.T                                  # one-time (K, N) transpose
    m_pad = _round_up(M, tm3)
    k_pad = _round_up(K, tk)
    n_pad = _round_up(N, tn)
    xp = (jnp.pad(x2d, ((0, m_pad - M), (0, k_pad - K)))
          if (m_pad, k_pad) != (M, K) else x2d)
    if (k_pad, n_pad) != (K, N):
        wt = jnp.pad(wt, ((0, k_pad - K), (0, n_pad - N)))
    bp = jnp.pad(b2d, ((0, 0), (0, n_pad - N))) if n_pad != N else b2d

    est3 = (2 * (tm3 * tk * itemsize + tk * tn * itemsize
                 + tm3 * tn * out_itemsize)
            + tm3 * tn * 4 + 8 * tn * 4 + (2 << 20))

    out = pl.pallas_call(
        _linear_tiled_kernel,
        out_shape=jax.ShapeDtypeStruct((m_pad, n_pad), out_dtype),
        grid_spec=pltpu.PrefetchScalarGridSpec(
            num_scalar_prefetch=0,
            grid=(m_pad // tm3, n_pad // tn, k_pad // tk),
            in_specs=[
                pl.BlockSpec((tm3, tk), lambda i, j, k: (i, k)),  # x tile
                pl.BlockSpec((tk, tn), lambda i, j, k: (k, j)),   # (K,N) weight tile
                pl.BlockSpec((1, tn), lambda i, j, k: (0, j)),    # bias tile
            ],
            out_specs=pl.BlockSpec((tm3, tn), lambda i, j, k: (i, j)),
            scratch_shapes=[pltpu.VMEM((tm3, tn), jnp.float32)],
        ),
        compiler_params=pltpu.CompilerParams(
            dimension_semantics=("parallel", "parallel", "arbitrary"),
            vmem_limit_bytes=min(budget, max(est3, 16 << 20))),
    )(xp, wt, bp)
    return out[:M, :N].reshape(*orig_lead, N)


# ---------------------------------------------------------------------------
# Demo / self-check
# ---------------------------------------------------------------------------
if __name__ == "__main__":
    dim = 512            # MatMulBlock default: nn.Linear(512, 512)
    batch, seq = 2, 8    # x: (2, 8, 512) -> flattened to (16, 512)

    key = jax.random.PRNGKey(0)
    kx, kw, kb, kx2 = jax.random.split(key, 4)

    # Deterministic PyTorch-style Linear init: U(-1/sqrt(dim), 1/sqrt(dim))
    bound = 1.0 / jnp.sqrt(dim)
    weight = jax.random.uniform(kw, (dim, dim), jnp.float32, -bound, bound)
    bias = jax.random.uniform(kb, (dim,), jnp.float32, -bound, bound)
    x = jax.random.normal(kx, (batch, seq, dim), jnp.float32)

    # Path 1: whole problem resident in VMEM, single invocation, no pad/slice.
    y = linear_pallas(x, weight, bias)
    jax.block_until_ready(y)
    y_ref = x @ weight.T + bias
    assert y.shape == (batch, seq, dim)
    assert jnp.allclose(y, y_ref, atol=1e-3, rtol=1e-3), float(
        jnp.max(jnp.abs(y - y_ref)))

    # Path 2: row-tiled grid with the weight single-buffered / resident.
    x2 = jax.random.normal(kx2, (4, 128, dim), jnp.float32)  # M=512 -> grid=(4,)
    y2 = linear_pallas(x2, weight, bias, block_m=128)
    jax.block_until_ready(y2)
    y2_ref = x2 @ weight.T + bias
    assert y2.shape == (4, 128, dim)
    assert jnp.allclose(y2, y2_ref, atol=1e-3, rtol=1e-3), float(
        jnp.max(jnp.abs(y2 - y2_ref)))

    # Optional bf16 compute path (f32 accumulation) — loose tolerance.
    y3 = linear_pallas(x, weight, bias, compute_dtype=jnp.bfloat16)
    jax.block_until_ready(y3)
    assert jnp.allclose(y3, y_ref, atol=5e-2, rtol=5e-2), float(
        jnp.max(jnp.abs(y3 - y_ref)))

    print("KERNEL_OK")
</pallas_src>

<mosaic_0001>
module attributes {stable_mosaic.version = 11 : i64} {
  func.func @_linear_resident_kernel(%arg0: memref<16x512xf32, #tpu.memory_space<vmem>>, %arg1: memref<512x512xf32, #tpu.memory_space<vmem>>, %arg2: memref<1x512xf32, #tpu.memory_space<vmem>>, %arg3: memref<16x512xf32, #tpu.memory_space<vmem>>) attributes {dimension_semantics = [], scalar_prefetch = 0 : i64, scratch_operands = 0 : i64, tpu.core_type = #tpu.core_type<tc>} {
    %c0 = arith.constant 0 : index
    %c0_0 = arith.constant 0 : index
    %0 = vector.load %arg0[%c0, %c0_0] : memref<16x512xf32, #tpu.memory_space<vmem>>, vector<16x512xf32>
    %c0_1 = arith.constant 0 : index
    %c0_2 = arith.constant 0 : index
    %1 = vector.load %arg1[%c0_1, %c0_2] : memref<512x512xf32, #tpu.memory_space<vmem>>, vector<512x512xf32>
    %cst = arith.constant dense<0.000000e+00> : vector<16x512xf32>
    %2 = tpu.matmul %0, %1, %cst {dimension_numbers = #tpu.dot_dimension_numbers<[1], [1], [0], [0], [0, 0, 1, 0], [], []>} : vector<16x512xf32>, vector<512x512xf32>, vector<16x512xf32> -> vector<16x512xf32>
    %c0_3 = arith.constant 0 : index
    %c0_4 = arith.constant 0 : index
    %3 = vector.load %arg2[%c0_3, %c0_4] : memref<1x512xf32, #tpu.memory_space<vmem>>, vector<1x512xf32>
    %4 = vector.broadcast %3 : vector<1x512xf32> to vector<16x512xf32>
    %5 = arith.addf %2, %4 : vector<16x512xf32>
    %c0_5 = arith.constant 0 : index
    %c0_6 = arith.constant 0 : index
    %6 = vector.load %arg3[%c0_5, %c0_6] : memref<16x512xf32, #tpu.memory_space<vmem>>, vector<16x512xf32>
    tpu.vector_store %arg3[%c0_5, %c0_6], %5 {strides = array<i32>} : memref<16x512xf32, #tpu.memory_space<vmem>>, vector<16x512xf32>,
    return
  }
}

</mosaic_0001>

<llo_original>
// kernel: tpu_custom_call.1
$region0: #{tpu_custom_call.1}
  #allocation0 [shape = 'u32[]', space=smem, size = 0x4, offset = 0x4, fixed_abs, tag = 'smem constant byte address 0x4 - core index']
  #allocation1 [shape = 'u32[72,128]{1,0:T(1,128)}', space=vmem, size = 0x9000, scoped, tag = 'internal scratch']
  %s0 = inlined_call_operand.hbm [shape: f32[16,512], index: 0, kind: input, shape index: {}]
  %s1 = inlined_call_operand.hbm [shape: f32[512,512], index: 1, kind: input, shape index: {}]
  %s2 = inlined_call_operand.hbm [shape: f32[1,512], index: 2, kind: input, shape index: {}]
  %s3 = inlined_call_operand.hbm [shape: f32[16,512], index: 3, kind: output, shape index: {}]
  %s4 = sld [smem:[#allocation0]]
  $region34: #{tpu_custom_call.1} parent=0
    _
  %s6 = ssub.s32 1, %s4
  %s7 = scalar_select 0, %s6, %s4
  $region1: #{tpu_custom_call.1} parent=0
    #allocation2 [shape = 'u8[32768]{0}', space=vmem, size = 0x8000, scoped, tag = 'input window, operand 0, single buffered']
    #allocation3 [shape = 's32[1]{0}', space=sflag, size = 0x4, scoped, tag = 'scoped memory for tpu_custom_call.1']
    #allocation4 [shape = 's32[1]{0}', space=sflag, size = 0x4, scoped, tag = 'scoped memory for tpu_custom_call.1']
    #allocation5 [shape = 'u8[1048576]{0}', space=vmem, size = 0x100000, scoped, tag = 'input window, operand 1, single buffered']
    #allocation6 [shape = 's32[1]{0}', space=sflag, size = 0x4, scoped, tag = 'scoped memory for tpu_custom_call.1']
    #allocation7 [shape = 'u8[2048]{0}', space=vmem, size = 0x800, scoped, tag = 'input window, operand 2, single buffered']
    #allocation8 [shape = 'u8[32768]{0}', space=vmem, size = 0x8000, scoped, tag = 'output window, operand 0, single buffered']
    %8 = vsyncpa [#allocation3], 0
    %9 = vsyncpa [#allocation6], 0
    %10 = vsyncpa [#allocation4], 0
    // Predicated region
    $region2: #{tpu_custom_call.1} parent=1 // pred_check
      _
    $region3: #{tpu_custom_call.1} parent=1 // pred_check_branch
      %12 = sbr.rel (0) target = $region5
    $region4: #{tpu_custom_call.1} parent=1 // pred_region
      %14 = vsyncadd [#allocation3], 0
      %s15 = sshll.u32 %s0, 4
      %s16 = int_to_ptr.hbm [resolvable:$true] %s15
      %s17 = sshll.u32 [#allocation2], 4
      %s18 = int_to_ptr.vmem [resolvable:$true] %s17
      %23 = dma.hbm_to_vmem [thread:$0]  %s16, 1024, %s18, [#allocation3], 512, 512, 32
    $region5: #{tpu_custom_call.1} parent=1 // pred_fallthru
      _
    // Predicated region
    $region6: #{tpu_custom_call.1} parent=1 // pred_check
      _
    $region7: #{tpu_custom_call.1} parent=1 // pred_check_branch
      %25 = sbr.rel (0) target = $region9
    $region8: #{tpu_custom_call.1} parent=1 // pred_region
      %27 = vsyncadd [#allocation6], 0
      %s28 = sshll.u32 %s1, 4
      %s29 = int_to_ptr.hbm [resolvable:$true] %s28
      %s30 = sshll.u32 [#allocation5], 4
      %s31 = int_to_ptr.vmem [resolvable:$true] %s30
      %36 = dma.hbm_to_vmem [thread:$0]  %s29, 32768, %s31, [#allocation6], 512, 512, 32
    $region9: #{tpu_custom_call.1} parent=1 // pred_fallthru
      _
    // Predicated region
    $region10: #{tpu_custom_call.1} parent=1 // pred_check
      _
    $region11: #{tpu_custom_call.1} parent=1 // pred_check_branch
      %38 = sbr.rel (0) target = $region13
    $region12: #{tpu_custom_call.1} parent=1 // pred_region
      %40 = vsyncadd [#allocation6], 0
      %s42 = sshll.u32 %s2, 4
      %s43 = int_to_ptr.hbm [resolvable:$true] %s42
      %s44 = sshll.u32 [#allocation7], 4
      %s45 = int_to_ptr.vmem [resolvable:$true] %s44
      %47 = dma.hbm_to_vmem [thread:$0]  %s43, 64, %s45, [#allocation6]
    $region13: #{tpu_custom_call.1} parent=1 // pred_fallthru
      _
    // Predicated region
    $region14: #{tpu_custom_call.1} parent=1 // pred_check
      _
    $region15: #{tpu_custom_call.1} parent=1 // pred_check_branch
      %49 = sbr.rel (0) target = $region17
    $region16: #{tpu_custom_call.1} parent=1 // pred_region
      %51 = dma.done [#allocation3], 1024
    $region17: #{tpu_custom_call.1} parent=1 // pred_fallthru
      _
    // Predicated region
    $region18: #{tpu_custom_call.1} parent=1 // pred_check
      _
    $region19: #{tpu_custom_call.1} parent=1 // pred_check_branch
      %53 = sbr.rel (0) target = $region21
    $region20: #{tpu_custom_call.1} parent=1 // pred_region
      %55 = dma.done [#allocation6], 32768
    $region21: #{tpu_custom_call.1} parent=1 // pred_fallthru
      _
    // Predicated region
    $region22: #{tpu_custom_call.1} parent=1 // pred_check
      _
    $region23: #{tpu_custom_call.1} parent=1 // pred_check_branch
      %57 = sbr.rel (0) target = $region25
    $region24: #{tpu_custom_call.1} parent=1 // pred_region
      %59 = dma.done [#allocation6], 64
    $region25: #{tpu_custom_call.1} parent=1 // pred_fallthru
      _
    %v60 = vld [vmem:[#allocation2] sm:$0xff]
    %v61 = vld [vmem:[#allocation2 + $0x8] sm:$0xff]
    %v62 = vld [vmem:[#allocation2 + $0x10] sm:$0xff]
    %v63 = vld [vmem:[#allocation2 + $0x18] sm:$0xff]
    %v64 = vld [vmem:[#allocation2 + $0x20] sm:$0xff]
    %v65 = vld [vmem:[#allocation2 + $0x28] sm:$0xff]
    %v66 = vld [vmem:[#allocation2 + $0x30] sm:$0xff]
    %v67 = vld [vmem:[#allocation2 + $0x38] sm:$0xff]
    %v68 = vld [vmem:[#allocation5] sm:$0xff]
    %v69 = vld [vmem:[#allocation5 + $0x8] sm:$0xff]
    %v70 = vld [vmem:[#allocation5 + $0x10] sm:$0xff]
    %v71 = vld [vmem:[#allocation5 + $0x18] sm:$0xff]
    %v72 = vld [vmem:[#allocation5 + $0x20] sm:$0xff]
    %v73 = vld [vmem:[#allocation5 + $0x28] sm:$0xff]
    %v74 = vld [vmem:[#allocation5 + $0x30] sm:$0xff]
    %v75 = vld [vmem:[#allocation5 + $0x38] sm:$0xff]
    %v76 = vld [vmem:[#allocation5 + $0x40] sm:$0xff]
    %v77 = vld [vmem:[#allocation5 + $0x48] sm:$0xff]
    %v78 = vld [vmem:[#allocation5 + $0x50] sm:$0xff]
    %v79 = vld [vmem:[#allocation5 + $0x58] sm:$0xff]
    %v80 = vld [vmem:[#allocation5 + $0x60] sm:$0xff]
    %v81 = vld [vmem:[#allocation5 + $0x68] sm:$0xff]
    %v82 = vld [vmem:[#allocation5 + $0x70] sm:$0xff]
    %v83 = vld [vmem:[#allocation5 + $0x78] sm:$0xff]
    %v84 = vld [vmem:[#allocation5 + $0x80] sm:$0xff]
    %v85 = vld [vmem:[#allocation5 + $0x88] sm:$0xff]
    %v86 = vld [vmem:[#allocation5 + $0x90] sm:$0xff]
    %v87 = vld [vmem:[#allocation5 + $0x98] sm:$0xff]
    %v88 = vld [vmem:[#allocation5 + $0xa0] sm:$0xff]
    %v89 = vld [vmem:[#allocation5 + $0xa8] sm:$0xff]
    %v90 = vld [vmem:[#allocation5 + $0xb0] sm:$0xff]
    %v91 = vld [vmem:[#allocation5 + $0xb8] sm:$0xff]
    %v92 = vld [vmem:[#allocation5 + $0xc0] sm:$0xff]
    %v93 = vld [vmem:[#allocation5 + $0xc8] sm:$0xff]
    %v94 = vld [vmem:[#allocation5 + $0xd0] sm:$0xff]
    %v95 = vld [vmem:[#allocation5 + $0xd8] sm:$0xff]
    %v96 = vld [vmem:[#allocation5 + $0xe0] sm:$0xff]
    %v97 = vld [vmem:[#allocation5 + $0xe8] sm:$0xff]
    %v98 = vld [vmem:[#allocation5 + $0xf0] sm:$0xff]
    %v99 = vld [vmem:[#allocation5 + $0xf8] sm:$0xff]
    %v100 = vld [vmem:[#allocation5 + $0x100] sm:$0xff]
    %v101 = vld [vmem:[#allocation5 + $0x108] sm:$0xff]
    %v102 = vld [vmem:[#allocation5 + $0x110] sm:$0xff]
    %v103 = vld [vmem:[#allocation5 + $0x118] sm:$0xff]
    %v104 = vld [vmem:[#allocation5 + $0x120] sm:$0xff]
    %v105 = vld [vmem:[#allocation5 + $0x128] sm:$0xff]
    %v106 = vld [vmem:[#allocation5 + $0x130] sm:$0xff]
    %v107 = vld [vmem:[#allocation5 + $0x138] sm:$0xff]
    %v108 = vld [vmem:[#allocation5 + $0x140] sm:$0xff]
    %v109 = vld [vmem:[#allocation5 + $0x148] sm:$0xff]
    %v110 = vld [vmem:[#allocation5 + $0x150] sm:$0xff]
    %v111 = vld [vmem:[#allocation5 + $0x158] sm:$0xff]
    %v112 = vld [vmem:[#allocation5 + $0x160] sm:$0xff]
    %v113 = vld [vmem:[#allocation5 + $0x168] sm:$0xff]
    %v114 = vld [vmem:[#allocation5 + $0x170] sm:$0xff]
    %v115 = vld [vmem:[#allocation5 + $0x178] sm:$0xff]
    %v116 = vld [vmem:[#allocation5 + $0x180] sm:$0xff]
    %v117 = vld [vmem:[#allocation5 + $0x188] sm:$0xff]
    %v118 = vld [vmem:[#allocation5 + $0x190] sm:$0xff]
    %v119 = vld [vmem:[#allocation5 + $0x198] sm:$0xff]
    %v120 = vld [vmem:[#allocation5 + $0x1a0] sm:$0xff]
    %v121 = vld [vmem:[#allocation5 + $0x1a8] sm:$0xff]
    %v122 = vld [vmem:[#allocation5 + $0x1b0] sm:$0xff]
    %v123 = vld [vmem:[#allocation5 + $0x1b8] sm:$0xff]
    %v124 = vld [vmem:[#allocation5 + $0x1c0] sm:$0xff]
    %v125 = vld [vmem:[#allocation5 + $0x1c8] sm:$0xff]
    %v126 = vld [vmem:[#allocation5 + $0x1d0] sm:$0xff]
    %v127 = vld [vmem:[#allocation5 + $0x1d8] sm:$0xff]
    %v128 = vld [vmem:[#allocation5 + $0x1e0] sm:$0xff]
    %v129 = vld [vmem:[#allocation5 + $0x1e8] sm:$0xff]
    %v130 = vld [vmem:[#allocation5 + $0x1f0] sm:$0xff]
    %v131 = vld [vmem:[#allocation5 + $0x1f8] sm:$0xff]
    %v132 = vld [vmem:[#allocation5 + $0x200] sm:$0xff]
    %v133 = vld [vmem:[#allocation5 + $0x208] sm:$0xff]
    %v134 = vld [vmem:[#allocation5 + $0x210] sm:$0xff]
    %v135 = vld [vmem:[#allocation5 + $0x218] sm:$0xff]
    %v136 = vld [vmem:[#allocation5 + $0x220] sm:$0xff]
    %v137 = vld [vmem:[#allocation5 + $0x228] sm:$0xff]
    %v138 = vld [vmem:[#allocation5 + $0x230] sm:$0xff]
    %v139 = vld [vmem:[#allocation5 + $0x238] sm:$0xff]
    %v140 = vld [vmem:[#allocation5 + $0x240] sm:$0xff]
    %v141 = vld [vmem:[#allocation5 + $0x248] sm:$0xff]
    %v142 = vld [vmem:[#allocation5 + $0x250] sm:$0xff]
    %v143 = vld [vmem:[#allocation5 + $0x258] sm:$0xff]
    %v144 = vld [vmem:[#allocation5 + $0x260] sm:$0xff]
    %v145 = vld [vmem:[#allocation5 + $0x268] sm:$0xff]
    %v146 = vld [vmem:[#allocation5 + $0x270] sm:$0xff]
    %v147 = vld [vmem:[#allocation5 + $0x278] sm:$0xff]
    %v148 = vld [vmem:[#allocation5 + $0x280] sm:$0xff]
    %v149 = vld [vmem:[#allocation5 + $0x288] sm:$0xff]
    %v150 = vld [vmem:[#allocation5 + $0x290] sm:$0xff]
    %v151 = vld [vmem:[#allocation5 + $0x298] sm:$0xff]
    %v152 = vld [vmem:[#allocation5 + $0x2a0] sm:$0xff]
    %v153 = vld [vmem:[#allocation5 + $0x2a8] sm:$0xff]
    %v154 = vld [vmem:[#allocation5 + $0x2b0] sm:$0xff]
    %v155 = vld [vmem:[#allocation5 + $0x2b8] sm:$0xff]
    %v156 = vld [vmem:[#allocation5 + $0x2c0] sm:$0xff]
    %v157 = vld [vmem:[#allocation5 + $0x2c8] sm:$0xff]
    %v158 = vld [vmem:[#allocation5 + $0x2d0] sm:$0xff]
    %v159 = vld [vmem:[#allocation5 + $0x2d8] sm:$0xff]
    %v160 = vld [vmem:[#allocation5 + $0x2e0] sm:$0xff]
    %v161 = vld [vmem:[#allocation5 + $0x2e8] sm:$0xff]
    %v162 = vld [vmem:[#allocation5 + $0x2f0] sm:$0xff]
    %v163 = vld [vmem:[#allocation5 + $0x2f8] sm:$0xff]
    %v164 = vld [vmem:[#allocation5 + $0x300] sm:$0xff]
    %v165 = vld [vmem:[#allocation5 + $0x308] sm:$0xff]
    %v166 = vld [vmem:[#allocation5 + $0x310] sm:$0xff]
    %v167 = vld [vmem:[#allocation5 + $0x318] sm:$0xff]
    %v168 = vld [vmem:[#allocation5 + $0x320] sm:$0xff]
    %v169 = vld [vmem:[#allocation5 + $0x328] sm:$0xff]
    %v170 = vld [vmem:[#allocation5 + $0x330] sm:$0xff]
    %v171 = vld [vmem:[#allocation5 + $0x338] sm:$0xff]
    %v172 = vld [vmem:[#allocation5 + $0x340] sm:$0xff]
    %v173 = vld [vmem:[#allocation5 + $0x348] sm:$0xff]
    %v174 = vld [vmem:[#allocation5 + $0x350] sm:$0xff]
    %v175 = vld [vmem:[#allocation5 + $0x358] sm:$0xff]
    %v176 = vld [vmem:[#allocation5 + $0x360] sm:$0xff]
    %v177 = vld [vmem:[#allocation5 + $0x368] sm:$0xff]
    %v178 = vld [vmem:[#allocation5 + $0x370] sm:$0xff]
    %v179 = vld [vmem:[#allocation5 + $0x378] sm:$0xff]
    %v180 = vld [vmem:[#allocation5 + $0x380] sm:$0xff]
    %v181 = vld [vmem:[#allocation5 + $0x388] sm:$0xff]
    %v182 = vld [vmem:[#allocation5 + $0x390] sm:$0xff]
    %v183 = vld [vmem:[#allocation5 + $0x398] sm:$0xff]
    %v184 = vld [vmem:[#allocation5 + $0x3a0] sm:$0xff]
    %v185 = vld [vmem:[#allocation5 + $0x3a8] sm:$0xff]
    %v186 = vld [vmem:[#allocation5 + $0x3b0] sm:$0xff]
    %v187 = vld [vmem:[#allocation5 + $0x3b8] sm:$0xff]
    %v188 = vld [vmem:[#allocation5 + $0x3c0] sm:$0xff]
    %v189 = vld [vmem:[#allocation5 + $0x3c8] sm:$0xff]
    %v190 = vld [vmem:[#allocation5 + $0x3d0] sm:$0xff]
    %v191 = vld [vmem:[#allocation5 + $0x3d8] sm:$0xff]
    %v192 = vld [vmem:[#allocation5 + $0x3e0] sm:$0xff]
    %v193 = vld [vmem:[#allocation5 + $0x3e8] sm:$0xff]
    %v194 = vld [vmem:[#allocation5 + $0x3f0] sm:$0xff]
    %v195 = vld [vmem:[#allocation5 + $0x3f8] sm:$0xff]
    %v196 = vld [vmem:[#allocation5 + $0x400] sm:$0xff]
    %v197 = vld [vmem:[#allocation5 + $0x408] sm:$0xff]
    %v198 = vld [vmem:[#allocation5 + $0x410] sm:$0xff]
    %v199 = vld [vmem:[#allocation5 + $0x418] sm:$0xff]
    %v200 = vld [vmem:[#allocation5 + $0x420] sm:$0xff]
    %v201 = vld [vmem:[#allocation5 + $0x428] sm:$0xff]
    %v202 = vld [vmem:[#allocation5 + $0x430] sm:$0xff]
    %v203 = vld [vmem:[#allocation5 + $0x438] sm:$0xff]
    %v204 = vld [vmem:[#allocation5 + $0x440] sm:$0xff]
    %v205 = vld [vmem:[#allocation5 + $0x448] sm:$0xff]
    %v206 = vld [vmem:[#allocation5 + $0x450] sm:$0xff]
    %v207 = vld [vmem:[#allocation5 + $0x458] sm:$0xff]
    %v208 = vld [vmem:[#allocation5 + $0x460] sm:$0xff]
    %v209 = vld [vmem:[#allocation5 + $0x468] sm:$0xff]
    %v210 = vld [vmem:[#allocation5 + $0x470] sm:$0xff]
    %v211 = vld [vmem:[#allocation5 + $0x478] sm:$0xff]
    %v212 = vld [vmem:[#allocation5 + $0x480] sm:$0xff]
    %v213 = vld [vmem:[#allocation5 + $0x488] sm:$0xff]
    %v214 = vld [vmem:[#allocation5 + $0x490] sm:$0xff]
    %v215 = vld [vmem:[#allocation5 + $0x498] sm:$0xff]
    %v216 = vld [vmem:[#allocation5 + $0x4a0] sm:$0xff]
    %v217 = vld [vmem:[#allocation5 + $0x4a8] sm:$0xff]
    %v218 = vld [vmem:[#allocation5 + $0x4b0] sm:$0xff]
    %v219 = vld [vmem:[#allocation5 + $0x4b8] sm:$0xff]
    %v220 = vld [vmem:[#allocation5 + $0x4c0] sm:$0xff]
    %v221 = vld [vmem:[#allocation5 + $0x4c8] sm:$0xff]
    %v222 = vld [vmem:[#allocation5 + $0x4d0] sm:$0xff]
    %v223 = vld [vmem:[#allocation5 + $0x4d8] sm:$0xff]
    %v224 = vld [vmem:[#allocation5 + $0x4e0] sm:$0xff]
    %v225 = vld [vmem:[#allocation5 + $0x4e8] sm:$0xff]
    %v226 = vld [vmem:[#allocation5 + $0x4f0] sm:$0xff]
    %v227 = vld [vmem:[#allocation5 + $0x4f8] sm:$0xff]
    %v228 = vld [vmem:[#allocation5 + $0x500] sm:$0xff]
    %v229 = vld [vmem:[#allocation5 + $0x508] sm:$0xff]
    %v230 = vld [vmem:[#allocation5 + $0x510] sm:$0xff]
    %v231 = vld [vmem:[#allocation5 + $0x518] sm:$0xff]
    %v232 = vld [vmem:[#allocation5 + $0x520] sm:$0xff]
    %v233 = vld [vmem:[#allocation5 + $0x528] sm:$0xff]
    %v234 = vld [vmem:[#allocation5 + $0x530] sm:$0xff]
    %v235 = vld [vmem:[#allocation5 + $0x538] sm:$0xff]
    %v236 = vld [vmem:[#allocation5 + $0x540] sm:$0xff]
    %v237 = vld [vmem:[#allocation5 + $0x548] sm:$0xff]
    %v238 = vld [vmem:[#allocation5 + $0x550] sm:$0xff]
    %v239 = vld [vmem:[#allocation5 + $0x558] sm:$0xff]
    %v240 = vld [vmem:[#allocation5 + $0x560] sm:$0xff]
    %v241 = vld [vmem:[#allocation5 + $0x568] sm:$0xff]
    %v242 = vld [vmem:[#allocation5 + $0x570] sm:$0xff]
    %v243 = vld [vmem:[#allocation5 + $0x578] sm:$0xff]
    %v244 = vld [vmem:[#allocation5 + $0x580] sm:$0xff]
    %v245 = vld [vmem:[#allocation5 + $0x588] sm:$0xff]
    %v246 = vld [vmem:[#allocation5 + $0x590] sm:$0xff]
    %v247 = vld [vmem:[#allocation5 + $0x598] sm:$0xff]
    %v248 = vld [vmem:[#allocation5 + $0x5a0] sm:$0xff]
    %v249 = vld [vmem:[#allocation5 + $0x5a8] sm:$0xff]
    %v250 = vld [vmem:[#allocation5 + $0x5b0] sm:$0xff]
    %v251 = vld [vmem:[#allocation5 + $0x5b8] sm:$0xff]
    %v252 = vld [vmem:[#allocation5 + $0x5c0] sm:$0xff]
    %v253 = vld [vmem:[#allocation5 + $0x5c8] sm:$0xff]
    %v254 = vld [vmem:[#allocation5 + $0x5d0] sm:$0xff]
    %v255 = vld [vmem:[#allocation5 + $0x5d8] sm:$0xff]
    %v256 = vld [vmem:[#allocation5 + $0x5e0] sm:$0xff]
    %v257 = vld [vmem:[#allocation5 + $0x5e8] sm:$0xff]
    %v258 = vld [vmem:[#allocation5 + $0x5f0] sm:$0xff]
    %v259 = vld [vmem:[#allocation5 + $0x5f8] sm:$0xff]
    %v260 = vld [vmem:[#allocation5 + $0x600] sm:$0xff]
    %v261 = vld [vmem:[#allocation5 + $0x608] sm:$0xff]
    %v262 = vld [vmem:[#allocation5 + $0x610] sm:$0xff]
    %v263 = vld [vmem:[#allocation5 + $0x618] sm:$0xff]
    %v264 = vld [vmem:[#allocation5 + $0x620] sm:$0xff]
    %v265 = vld [vmem:[#allocation5 + $0x628] sm:$0xff]
    %v266 = vld [vmem:[#allocation5 + $0x630] sm:$0xff]
    %v267 = vld [vmem:[#allocation5 + $0x638] sm:$0xff]
    %v268 = vld [vmem:[#allocation5 + $0x640] sm:$0xff]
    %v269 = vld [vmem:[#allocation5 + $0x648] sm:$0xff]
    %v270 = vld [vmem:[#allocation5 + $0x650] sm:$0xff]
    %v271 = vld [vmem:[#allocation5 + $0x658] sm:$0xff]
    %v272 = vld [vmem:[#allocation5 + $0x660] sm:$0xff]
    %v273 = vld [vmem:[#allocation5 + $0x668] sm:$0xff]
    %v274 = vld [vmem:[#allocation5 + $0x670] sm:$0xff]
    %v275 = vld [vmem:[#allocation5 + $0x678] sm:$0xff]
    %v276 = vld [vmem:[#allocation5 + $0x680] sm:$0xff]
    %v277 = vld [vmem:[#allocation5 + $0x688] sm:$0xff]
    %v278 = vld [vmem:[#allocation5 + $0x690] sm:$0xff]
    %v279 = vld [vmem:[#allocation5 + $0x698] sm:$0xff]
    %v280 = vld [vmem:[#allocation5 + $0x6a0] sm:$0xff]
    %v281 = vld [vmem:[#allocation5 + $0x6a8] sm:$0xff]
    %v282 = vld [vmem:[#allocation5 + $0x6b0] sm:$0xff]
    %v283 = vld [vmem:[#allocation5 + $0x6b8] sm:$0xff]
    %v284 = vld [vmem:[#allocation5 + $0x6c0] sm:$0xff]
    %v285 = vld [vmem:[#allocation5 + $0x6c8] sm:$0xff]
    %v286 = vld [vmem:[#allocation5 + $0x6d0] sm:$0xff]
    %v287 = vld [vmem:[#allocation5 + $0x6d8] sm:$0xff]
    %v288 = vld [vmem:[#allocation5 + $0x6e0] sm:$0xff]
    %v289 = vld [vmem:[#allocation5 + $0x6e8] sm:$0xff]
    %v290 = vld [vmem:[#allocation5 + $0x6f0] sm:$0xff]
    %v291 = vld [vmem:[#allocation5 + $0x6f8] sm:$0xff]
    %v292 = vld [vmem:[#allocation5 + $0x700] sm:$0xff]
    %v293 = vld [vmem:[#allocation5 + $0x708] sm:$0xff]
    %v294 = vld [vmem:[#allocation5 + $0x710] sm:$0xff]
    %v295 = vld [vmem:[#allocation5 + $0x718] sm:$0xff]
    %v296 = vld [vmem:[#allocation5 + $0x720] sm:$0xff]
    %v297 = vld [vmem:[#allocation5 + $0x728] sm:$0xff]
    %v298 = vld [vmem:[#allocation5 + $0x730] sm:$0xff]
    %v299 = vld [vmem:[#allocation5 + $0x738] sm:$0xff]
    %v300 = vld [vmem:[#allocation5 + $0x740] sm:$0xff]
    %v301 = vld [vmem:[#allocation5 + $0x748] sm:$0xff]
    %v302 = vld [vmem:[#allocation5 + $0x750] sm:$0xff]
    %v303 = vld [vmem:[#allocation5 + $0x758] sm:$0xff]
    %v304 = vld [vmem:[#allocation5 + $0x760] sm:$0xff]
    %v305 = vld [vmem:[#allocation5 + $0x768] sm:$0xff]
    %v306 = vld [vmem:[#allocation5 + $0x770] sm:$0xff]
    %v307 = vld [vmem:[#allocation5 + $0x778] sm:$0xff]
    %v308 = vld [vmem:[#allocation5 + $0x780] sm:$0xff]
    %v309 = vld [vmem:[#allocation5 + $0x788] sm:$0xff]
    %v310 = vld [vmem:[#allocation5 + $0x790] sm:$0xff]
    %v311 = vld [vmem:[#allocation5 + $0x798] sm:$0xff]
    %v312 = vld [vmem:[#allocation5 + $0x7a0] sm:$0xff]
    %v313 = vld [vmem:[#allocation5 + $0x7a8] sm:$0xff]
    %v314 = vld [vmem:[#allocation5 + $0x7b0] sm:$0xff]
    %v315 = vld [vmem:[#allocation5 + $0x7b8] sm:$0xff]
    %v316 = vld [vmem:[#allocation5 + $0x7c0] sm:$0xff]
    %v317 = vld [vmem:[#allocation5 + $0x7c8] sm:$0xff]
    %v318 = vld [vmem:[#allocation5 + $0x7d0] sm:$0xff]
    %v319 = vld [vmem:[#allocation5 + $0x7d8] sm:$0xff]
    %v320 = vld [vmem:[#allocation5 + $0x7e0] sm:$0xff]
    %v321 = vld [vmem:[#allocation5 + $0x7e8] sm:$0xff]
    %v322 = vld [vmem:[#allocation5 + $0x7f0] sm:$0xff]
    %v323 = vld [vmem:[#allocation5 + $0x7f8] sm:$0xff]
    %v324 = vld [vmem:[#allocation7] sm:$0xf]
    %v326 = vperm.slane %v324, 0
    %v327 = vperm.slane %v324, 1
    %v328 = vperm.slane %v324, 2
    %v329 = vperm.slane %v324, 3
    %334 = vmatpush.xpose.msra.mxu0 %v128
    %335 = vmatpush.xpose.msra.mxu0 %v124
    %336 = vmatpush.xpose.msra.mxu0 %v120
    %337 = vmatpush.xpose.msra.mxu0 %v116
    %338 = vmatpush.xpose.msra.mxu0 %v112
    %339 = vmatpush.xpose.msra.mxu0 %v108
    %340 = vmatpush.xpose.msra.mxu0 %v104
    %341 = vmatpush.xpose.msra.mxu0 %v100
    %342 = vmatpush.xpose.msra.mxu0 %v96
    %343 = vmatpush.xpose.msra.mxu0 %v92
    %344 = vmatpush.xpose.msra.mxu0 %v88
    %345 = vmatpush.xpose.msra.mxu0 %v84
    %346 = vmatpush.xpose.msra.mxu0 %v80
    %347 = vmatpush.xpose.msra.mxu0 %v76
    %348 = vmatpush.xpose.msra.mxu0 %v72
    %349 = vmatpush.xpose.msra.mxu0 %v68
    %350 = vmatmul.f32.gmra.mxu0 %v60
    %v351 = vpop.f32.mrf.mxu0
    %v352 = vadd.f32 %v326, %v351
    %353 = vmatmul.f32.gmra.mxu0 %v64
    %v354 = vpop.f32.mrf.mxu0
    %v355 = vadd.f32 %v326, %v354
    %356 = vdwg.mxu0
    %357 = vmatpush.xpose.msra.mxu0 %v129
    %358 = vmatpush.xpose.msra.mxu0 %v125
    %359 = vmatpush.xpose.msra.mxu0 %v121
    %360 = vmatpush.xpose.msra.mxu0 %v117
    %361 = vmatpush.xpose.msra.mxu0 %v113
    %362 = vmatpush.xpose.msra.mxu0 %v109
    %363 = vmatpush.xpose.msra.mxu0 %v105
    %364 = vmatpush.xpose.msra.mxu0 %v101
    %365 = vmatpush.xpose.msra.mxu0 %v97
    %366 = vmatpush.xpose.msra.mxu0 %v93
    %367 = vmatpush.xpose.msra.mxu0 %v89
    %368 = vmatpush.xpose.msra.mxu0 %v85
    %369 = vmatpush.xpose.msra.mxu0 %v81
    %370 = vmatpush.xpose.msra.mxu0 %v77
    %371 = vmatpush.xpose.msra.mxu0 %v73
    %372 = vmatpush.xpose.msra.mxu0 %v69
    %373 = vmatmul.f32.gmra.mxu0 %v61
    %v374 = vpop.f32.mrf.mxu0
    %v375 = vadd.f32 %v352, %v374
    %376 = vmatmul.f32.gmra.mxu0 %v65
    %v377 = vpop.f32.mrf.mxu0
    %v378 = vadd.f32 %v355, %v377
    %379 = vdwg.mxu0
    %380 = vmatpush.xpose.msra.mxu0 %v130
    %381 = vmatpush.xpose.msra.mxu0 %v126
    %382 = vmatpush.xpose.msra.mxu0 %v122
    %383 = vmatpush.xpose.msra.mxu0 %v118
    %384 = vmatpush.xpose.msra.mxu0 %v114
    %385 = vmatpush.xpose.msra.mxu0 %v110
    %386 = vmatpush.xpose.msra.mxu0 %v106
    %387 = vmatpush.xpose.msra.mxu0 %v102
    %388 = vmatpush.xpose.msra.mxu0 %v98
    %389 = vmatpush.xpose.msra.mxu0 %v94
    %390 = vmatpush.xpose.msra.mxu0 %v90
    %391 = vmatpush.xpose.msra.mxu0 %v86
    %392 = vmatpush.xpose.msra.mxu0 %v82
    %393 = vmatpush.xpose.msra.mxu0 %v78
    %394 = vmatpush.xpose.msra.mxu0 %v74
    %395 = vmatpush.xpose.msra.mxu0 %v70
    %396 = vmatmul.f32.gmra.mxu0 %v62
    %v397 = vpop.f32.mrf.mxu0
    %v398 = vadd.f32 %v375, %v397
    %399 = vmatmul.f32.gmra.mxu0 %v66
    %v400 = vpop.f32.mrf.mxu0
    %v401 = vadd.f32 %v378, %v400
    %402 = vdwg.mxu0
    %403 = vmatpush.xpose.msra.mxu0 %v131
    %404 = vmatpush.xpose.msra.mxu0 %v127
    %405 = vmatpush.xpose.msra.mxu0 %v123
    %406 = vmatpush.xpose.msra.mxu0 %v119
    %407 = vmatpush.xpose.msra.mxu0 %v115
    %408 = vmatpush.xpose.msra.mxu0 %v111
    %409 = vmatpush.xpose.msra.mxu0 %v107
    %410 = vmatpush.xpose.msra.mxu0 %v103
    %411 = vmatpush.xpose.msra.mxu0 %v99
    %412 = vmatpush.xpose.msra.mxu0 %v95
    %413 = vmatpush.xpose.msra.mxu0 %v91
    %414 = vmatpush.xpose.msra.mxu0 %v87
    %415 = vmatpush.xpose.msra.mxu0 %v83
    %416 = vmatpush.xpose.msra.mxu0 %v79
    %417 = vmatpush.xpose.msra.mxu0 %v75
    %418 = vmatpush.xpose.msra.mxu0 %v71
    %419 = vmatmul.f32.gmra.mxu0 %v63
    %v420 = vpop.f32.mrf.mxu0
    %v421 = vadd.f32 %v398, %v420
    %422 = vmatmul.f32.gmra.mxu0 %v67
    %v423 = vpop.f32.mrf.mxu0
    %v424 = vadd.f32 %v401, %v423
    %425 = vdwg.mxu0
    %426 = vmatpush.xpose.msra.mxu0 %v192
    %427 = vmatpush.xpose.msra.mxu0 %v188
    %428 = vmatpush.xpose.msra.mxu0 %v184
    %429 = vmatpush.xpose.msra.mxu0 %v180
    %430 = vmatpush.xpose.msra.mxu0 %v176
    %431 = vmatpush.xpose.msra.mxu0 %v172
    %432 = vmatpush.xpose.msra.mxu0 %v168
    %433 = vmatpush.xpose.msra.mxu0 %v164
    %434 = vmatpush.xpose.msra.mxu0 %v160
    %435 = vmatpush.xpose.msra.mxu0 %v156
    %436 = vmatpush.xpose.msra.mxu0 %v152
    %437 = vmatpush.xpose.msra.mxu0 %v148
    %438 = vmatpush.xpose.msra.mxu0 %v144
    %439 = vmatpush.xpose.msra.mxu0 %v140
    %440 = vmatpush.xpose.msra.mxu0 %v136
    %441 = vmatpush.xpose.msra.mxu0 %v132
    %442 = vmatmul.f32.gmra.mxu0 %v60
    %v443 = vpop.f32.mrf.mxu0
    %v444 = vadd.f32 %v327, %v443
    %445 = vmatmul.f32.gmra.mxu0 %v64
    %v446 = vpop.f32.mrf.mxu0
    %v447 = vadd.f32 %v327, %v446
    %448 = vdwg.mxu0
    %449 = vmatpush.xpose.msra.mxu0 %v193
    %450 = vmatpush.xpose.msra.mxu0 %v189
    %451 = vmatpush.xpose.msra.mxu0 %v185
    %452 = vmatpush.xpose.msra.mxu0 %v181
    %453 = vmatpush.xpose.msra.mxu0 %v177
    %454 = vmatpush.xpose.msra.mxu0 %v173
    %455 = vmatpush.xpose.msra.mxu0 %v169
    %456 = vmatpush.xpose.msra.mxu0 %v165
    %457 = vmatpush.xpose.msra.mxu0 %v161
    %458 = vmatpush.xpose.msra.mxu0 %v157
    %459 = vmatpush.xpose.msra.mxu0 %v153
    %460 = vmatpush.xpose.msra.mxu0 %v149
    %461 = vmatpush.xpose.msra.mxu0 %v145
    %462 = vmatpush.xpose.msra.mxu0 %v141
    %463 = vmatpush.xpose.msra.mxu0 %v137
    %464 = vmatpush.xpose.msra.mxu0 %v133
    %465 = vmatmul.f32.gmra.mxu0 %v61
    %v466 = vpop.f32.mrf.mxu0
    %v467 = vadd.f32 %v444, %v466
    %468 = vmatmul.f32.gmra.mxu0 %v65
    %v469 = vpop.f32.mrf.mxu0
    %v470 = vadd.f32 %v447, %v469
    %471 = vdwg.mxu0
    %472 = vmatpush.xpose.msra.mxu0 %v194
    %473 = vmatpush.xpose.msra.mxu0 %v190
    %474 = vmatpush.xpose.msra.mxu0 %v186
    %475 = vmatpush.xpose.msra.mxu0 %v182
    %476 = vmatpush.xpose.msra.mxu0 %v178
    %477 = vmatpush.xpose.msra.mxu0 %v174
    %478 = vmatpush.xpose.msra.mxu0 %v170
    %479 = vmatpush.xpose.msra.mxu0 %v166
    %480 = vmatpush.xpose.msra.mxu0 %v162
    %481 = vmatpush.xpose.msra.mxu0 %v158
    %482 = vmatpush.xpose.msra.mxu0 %v154
    %483 = vmatpush.xpose.msra.mxu0 %v150
    %484 = vmatpush.xpose.msra.mxu0 %v146
    %485 = vmatpush.xpose.msra.mxu0 %v142
    %486 = vmatpush.xpose.msra.mxu0 %v138
    %487 = vmatpush.xpose.msra.mxu0 %v134
    %488 = vmatmul.f32.gmra.mxu0 %v62
    %v489 = vpop.f32.mrf.mxu0
    %v490 = vadd.f32 %v467, %v489
    %491 = vmatmul.f32.gmra.mxu0 %v66
    %v492 = vpop.f32.mrf.mxu0
    %v493 = vadd.f32 %v470, %v492
    %494 = vdwg.mxu0
    %495 = vmatpush.xpose.msra.mxu0 %v195
    %496 = vmatpush.xpose.msra.mxu0 %v191
    %497 = vmatpush.xpose.msra.mxu0 %v187
    %498 = vmatpush.xpose.msra.mxu0 %v183
    %499 = vmatpush.xpose.msra.mxu0 %v179
    %500 = vmatpush.xpose.msra.mxu0 %v175
    %501 = vmatpush.xpose.msra.mxu0 %v171
    %502 = vmatpush.xpose.msra.mxu0 %v167
    %503 = vmatpush.xpose.msra.mxu0 %v163
    %504 = vmatpush.xpose.msra.mxu0 %v159
    %505 = vmatpush.xpose.msra.mxu0 %v155
    %506 = vmatpush.xpose.msra.mxu0 %v151
    %507 = vmatpush.xpose.msra.mxu0 %v147
    %508 = vmatpush.xpose.msra.mxu0 %v143
    %509 = vmatpush.xpose.msra.mxu0 %v139
    %510 = vmatpush.xpose.msra.mxu0 %v135
    %511 = vmatmul.f32.gmra.mxu0 %v63
    %v512 = vpop.f32.mrf.mxu0
    %v513 = vadd.f32 %v490, %v512
    %514 = vmatmul.f32.gmra.mxu0 %v67
    %v515 = vpop.f32.mrf.mxu0
    %v516 = vadd.f32 %v493, %v515
    %517 = vdwg.mxu0
    %518 = vmatpush.xpose.msra.mxu0 %v256
    %519 = vmatpush.xpose.msra.mxu0 %v252
    %520 = vmatpush.xpose.msra.mxu0 %v248
    %521 = vmatpush.xpose.msra.mxu0 %v244
    %522 = vmatpush.xpose.msra.mxu0 %v240
    %523 = vmatpush.xpose.msra.mxu0 %v236
    %524 = vmatpush.xpose.msra.mxu0 %v232
    %525 = vmatpush.xpose.msra.mxu0 %v228
    %526 = vmatpush.xpose.msra.mxu0 %v224
    %527 = vmatpush.xpose.msra.mxu0 %v220
    %528 = vmatpush.xpose.msra.mxu0 %v216
    %529 = vmatpush.xpose.msra.mxu0 %v212
    %530 = vmatpush.xpose.msra.mxu0 %v208
    %531 = vmatpush.xpose.msra.mxu0 %v204
    %532 = vmatpush.xpose.msra.mxu0 %v200
    %533 = vmatpush.xpose.msra.mxu0 %v196
    %534 = vmatmul.f32.gmra.mxu0 %v60
    %v535 = vpop.f32.mrf.mxu0
    %v536 = vadd.f32 %v328, %v535
    %537 = vmatmul.f32.gmra.mxu0 %v64
    %v538 = vpop.f32.mrf.mxu0
    %v539 = vadd.f32 %v328, %v538
    %540 = vdwg.mxu0
    %541 = vmatpush.xpose.msra.mxu0 %v257
    %542 = vmatpush.xpose.msra.mxu0 %v253
    %543 = vmatpush.xpose.msra.mxu0 %v249
    %544 = vmatpush.xpose.msra.mxu0 %v245
    %545 = vmatpush.xpose.msra.mxu0 %v241
    %546 = vmatpush.xpose.msra.mxu0 %v237
    %547 = vmatpush.xpose.msra.mxu0 %v233
    %548 = vmatpush.xpose.msra.mxu0 %v229
    %549 = vmatpush.xpose.msra.mxu0 %v225
    %550 = vmatpush.xpose.msra.mxu0 %v221
    %551 = vmatpush.xpose.msra.mxu0 %v217
    %552 = vmatpush.xpose.msra.mxu0 %v213
    %553 = vmatpush.xpose.msra.mxu0 %v209
    %554 = vmatpush.xpose.msra.mxu0 %v205
    %555 = vmatpush.xpose.msra.mxu0 %v201
    %556 = vmatpush.xpose.msra.mxu0 %v197
    %557 = vmatmul.f32.gmra.mxu0 %v61
    %v558 = vpop.f32.mrf.mxu0
    %v559 = vadd.f32 %v536, %v558
    %560 = vmatmul.f32.gmra.mxu0 %v65
    %v561 = vpop.f32.mrf.mxu0
    %v562 = vadd.f32 %v539, %v561
    %563 = vdwg.mxu0
    %564 = vmatpush.xpose.msra.mxu0 %v258
    %565 = vmatpush.xpose.msra.mxu0 %v254
    %566 = vmatpush.xpose.msra.mxu0 %v250
    %567 = vmatpush.xpose.msra.mxu0 %v246
    %568 = vmatpush.xpose.msra.mxu0 %v242
    %569 = vmatpush.xpose.msra.mxu0 %v238
    %570 = vmatpush.xpose.msra.mxu0 %v234
    %571 = vmatpush.xpose.msra.mxu0 %v230
    %572 = vmatpush.xpose.msra.mxu0 %v226
    %573 = vmatpush.xpose.msra.mxu0 %v222
    %574 = vmatpush.xpose.msra.mxu0 %v218
    %575 = vmatpush.xpose.msra.mxu0 %v214
    %576 = vmatpush.xpose.msra.mxu0 %v210
    %577 = vmatpush.xpose.msra.mxu0 %v206
    %578 = vmatpush.xpose.msra.mxu0 %v202
    %579 = vmatpush.xpose.msra.mxu0 %v198
    %580 = vmatmul.f32.gmra.mxu0 %v62
    %v581 = vpop.f32.mrf.mxu0
    %v582 = vadd.f32 %v559, %v581
    %583 = vmatmul.f32.gmra.mxu0 %v66
    %v584 = vpop.f32.mrf.mxu0
    %v585 = vadd.f32 %v562, %v584
    %586 = vdwg.mxu0
    %587 = vmatpush.xpose.msra.mxu0 %v259
    %588 = vmatpush.xpose.msra.mxu0 %v255
    %589 = vmatpush.xpose.msra.mxu0 %v251
    %590 = vmatpush.xpose.msra.mxu0 %v247
    %591 = vmatpush.xpose.msra.mxu0 %v243
    %592 = vmatpush.xpose.msra.mxu0 %v239
    %593 = vmatpush.xpose.msra.mxu0 %v235
    %594 = vmatpush.xpose.msra.mxu0 %v231
    %595 = vmatpush.xpose.msra.mxu0 %v227
    %596 = vmatpush.xpose.msra.mxu0 %v223
    %597 = vmatpush.xpose.msra.mxu0 %v219
    %598 = vmatpush.xpose.msra.mxu0 %v215
    %599 = vmatpush.xpose.msra.mxu0 %v211
    %600 = vmatpush.xpose.msra.mxu0 %v207
    %601 = vmatpush.xpose.msra.mxu0 %v203
    %602 = vmatpush.xpose.msra.mxu0 %v199
    %603 = vmatmul.f32.gmra.mxu0 %v63
    %v604 = vpop.f32.mrf.mxu0
    %v605 = vadd.f32 %v582, %v604
    %606 = vmatmul.f32.gmra.mxu0 %v67
    %v607 = vpop.f32.mrf.mxu0
    %v608 = vadd.f32 %v585, %v607
    %609 = vdwg.mxu0
    %610 = vmatpush.xpose.msra.mxu0 %v320
    %611 = vmatpush.xpose.msra.mxu0 %v316
    %612 = vmatpush.xpose.msra.mxu0 %v312
    %613 = vmatpush.xpose.msra.mxu0 %v308
    %614 = vmatpush.xpose.msra.mxu0 %v304
    %615 = vmatpush.xpose.msra.mxu0 %v300
    %616 = vmatpush.xpose.msra.mxu0 %v296
    %617 = vmatpush.xpose.msra.mxu0 %v292
    %618 = vmatpush.xpose.msra.mxu0 %v288
    %619 = vmatpush.xpose.msra.mxu0 %v284
    %620 = vmatpush.xpose.msra.mxu0 %v280
    %621 = vmatpush.xpose.msra.mxu0 %v276
    %622 = vmatpush.xpose.msra.mxu0 %v272
    %623 = vmatpush.xpose.msra.mxu0 %v268
    %624 = vmatpush.xpose.msra.mxu0 %v264
    %625 = vmatpush.xpose.msra.mxu0 %v260
    %626 = vmatmul.f32.gmra.mxu0 %v60
    %v627 = vpop.f32.mrf.mxu0
    %v628 = vadd.f32 %v329, %v627
    %629 = vmatmul.f32.gmra.mxu0 %v64
    %v630 = vpop.f32.mrf.mxu0
    %v631 = vadd.f32 %v329, %v630
    %632 = vdwg.mxu0
    %633 = vmatpush.xpose.msra.mxu0 %v321
    %634 = vmatpush.xpose.msra.mxu0 %v317
    %635 = vmatpush.xpose.msra.mxu0 %v313
    %636 = vmatpush.xpose.msra.mxu0 %v309
    %637 = vmatpush.xpose.msra.mxu0 %v305
    %638 = vmatpush.xpose.msra.mxu0 %v301
    %639 = vmatpush.xpose.msra.mxu0 %v297
    %640 = vmatpush.xpose.msra.mxu0 %v293
    %641 = vmatpush.xpose.msra.mxu0 %v289
    %642 = vmatpush.xpose.msra.mxu0 %v285
    %643 = vmatpush.xpose.msra.mxu0 %v281
    %644 = vmatpush.xpose.msra.mxu0 %v277
    %645 = vmatpush.xpose.msra.mxu0 %v273
    %646 = vmatpush.xpose.msra.mxu0 %v269
    %647 = vmatpush.xpose.msra.mxu0 %v265
    %648 = vmatpush.xpose.msra.mxu0 %v261
    %649 = vmatmul.f32.gmra.mxu0 %v61
    %v650 = vpop.f32.mrf.mxu0
    %v651 = vadd.f32 %v628, %v650
    %652 = vmatmul.f32.gmra.mxu0 %v65
    %v653 = vpop.f32.mrf.mxu0
    %v654 = vadd.f32 %v631, %v653
    %655 = vdwg.mxu0
    %656 = vmatpush.xpose.msra.mxu0 %v322
    %657 = vmatpush.xpose.msra.mxu0 %v318
    %658 = vmatpush.xpose.msra.mxu0 %v314
    %659 = vmatpush.xpose.msra.mxu0 %v310
    %660 = vmatpush.xpose.msra.mxu0 %v306
    %661 = vmatpush.xpose.msra.mxu0 %v302
    %662 = vmatpush.xpose.msra.mxu0 %v298
    %663 = vmatpush.xpose.msra.mxu0 %v294
    %664 = vmatpush.xpose.msra.mxu0 %v290
    %665 = vmatpush.xpose.msra.mxu0 %v286
    %666 = vmatpush.xpose.msra.mxu0 %v282
    %667 = vmatpush.xpose.msra.mxu0 %v278
    %668 = vmatpush.xpose.msra.mxu0 %v274
    %669 = vmatpush.xpose.msra.mxu0 %v270
    %670 = vmatpush.xpose.msra.mxu0 %v266
    %671 = vmatpush.xpose.msra.mxu0 %v262
    %672 = vmatmul.f32.gmra.mxu0 %v62
    %v673 = vpop.f32.mrf.mxu0
    %v674 = vadd.f32 %v651, %v673
    %675 = vmatmul.f32.gmra.mxu0 %v66
    %v676 = vpop.f32.mrf.mxu0
    %v677 = vadd.f32 %v654, %v676
    %678 = vdwg.mxu0
    %679 = vmatpush.xpose.msra.mxu0 %v323
    %680 = vmatpush.xpose.msra.mxu0 %v319
    %681 = vmatpush.xpose.msra.mxu0 %v315
    %682 = vmatpush.xpose.msra.mxu0 %v311
    %683 = vmatpush.xpose.msra.mxu0 %v307
    %684 = vmatpush.xpose.msra.mxu0 %v303
    %685 = vmatpush.xpose.msra.mxu0 %v299
    %686 = vmatpush.xpose.msra.mxu0 %v295
    %687 = vmatpush.xpose.msra.mxu0 %v291
    %688 = vmatpush.xpose.msra.mxu0 %v287
    %689 = vmatpush.xpose.msra.mxu0 %v283
    %690 = vmatpush.xpose.msra.mxu0 %v279
    %691 = vmatpush.xpose.msra.mxu0 %v275
    %692 = vmatpush.xpose.msra.mxu0 %v271
    %693 = vmatpush.xpose.msra.mxu0 %v267
    %694 = vmatpush.xpose.msra.mxu0 %v263
    %695 = vmatmul.f32.gmra.mxu0 %v63
    %v696 = vpop.f32.mrf.mxu0
    %v697 = vadd.f32 %v674, %v696
    %698 = vmatmul.f32.gmra.mxu0 %v67
    %v699 = vpop.f32.mrf.mxu0
    %v700 = vadd.f32 %v677, %v699
    %701 = vdwg.mxu0
    %702 = vst [vmem:[#allocation8] sm:$0xff] %v421
    %703 = vst [vmem:[#allocation8 + $0x8] sm:$0xff] %v513
    %704 = vst [vmem:[#allocation8 + $0x10] sm:$0xff] %v605
    %705 = vst [vmem:[#allocation8 + $0x18] sm:$0xff] %v697
    %706 = vst [vmem:[#allocation8 + $0x20] sm:$0xff] %v424
    %707 = vst [vmem:[#allocation8 + $0x28] sm:$0xff] %v516
    %708 = vst [vmem:[#allocation8 + $0x30] sm:$0xff] %v608
    %709 = vst [vmem:[#allocation8 + $0x38] sm:$0xff] %v700
    // Predicated region
    $region26: #{tpu_custom_call.1} parent=1 // pred_check
      _
    $region27: #{tpu_custom_call.1} parent=1 // pred_check_branch
      %711 = sbr.rel (0) target = $region29
    $region28: #{tpu_custom_call.1} parent=1 // pred_region
      %713 = vsyncadd [#allocation4], 0
      %s714 = sshll.u32 [#allocation8], 4
      %s715 = int_to_ptr.vmem [resolvable:$true] %s714
      %s716 = sshll.u32 %s3, 4
      %s717 = int_to_ptr.hbm [resolvable:$true] %s716
      %722 = dma.vmem_to_hbm [thread:$0]  %s715, 1024, %s717, [#allocation4], 512, 512, 32
    $region29: #{tpu_custom_call.1} parent=1 // pred_fallthru
      _
    // Predicated region
    $region30: #{tpu_custom_call.1} parent=1 // pred_check
      _
    $region31: #{tpu_custom_call.1} parent=1 // pred_check_branch
      %724 = sbr.rel (0) target = $region33
    $region32: #{tpu_custom_call.1} parent=1 // pred_region
      %726 = dma.done [#allocation4], 1024
    $region33: #{tpu_custom_call.1} parent=1 // pred_fallthru
      _
    %727 = vsyncpa [#allocation3], 1
    %728 = vsyncpa [#allocation6], 1
    %729 = vsyncpa [#allocation4], 1

</llo_original>
